<compile_context>
chip_gen: v7x
topology: tpu7x:2x2x1
jax: 0.10.0
libtpu: 0.0.40
codegen_flags: <defaults>
</compile_context>

<pallas_src>
import jax
import jax.numpy as jnp
import numpy as np
from jax import lax
from jax.experimental import pallas as pl
from jax.experimental.pallas import tpu as pltpu


def _make_lrn_kernel(size, alpha, beta, k, C):
    pad_b = size // 2            # channels before c included in the window
    pad_a = (size - 1) // 2      # channels after c included in the window
    halo = size - 1

    def lrn_kernel(x_ref, o_ref, x2p_ref):
        # x_ref: (1, C, T) block; x2p_ref: (C + size - 1, T) f32 scratch (channel halo).
        x = x_ref[0].astype(jnp.float32)                     # (C, T)
        x2 = x * x
        T = x2.shape[1]

        if halo > 0:
            # Zero the halo rows, stage x^2 so shifted windows can be read back.
            if pad_b > 0:
                x2p_ref[pl.ds(0, pad_b), :] = jnp.zeros((pad_b, T), jnp.float32)
            if pad_a > 0:
                x2p_ref[pl.ds(pad_b + C, pad_a), :] = jnp.zeros((pad_a, T), jnp.float32)
            x2p_ref[pl.ds(pad_b, C), :] = x2

        # Windowed cross-channel sum = `size` shifted adds (VPU only).  The i == pad_b
        # term is x2 itself, already in registers — skip its VMEM read.
        s = x2
        for i in range(size):
            if i != pad_b:
                s = s + x2p_ref[pl.ds(i, C), :]

        t = k + alpha * s
        # out = x * t**(-beta), with cheap EUP lowering for the common exponents.
        if beta == 0.75:
            r = lax.rsqrt(t)                  # t^-1/2
            inv_div = r * jnp.sqrt(r)         # t^-1/2 * t^-1/4 = t^-3/4
        elif beta == 0.5:
            inv_div = lax.rsqrt(t)
        elif beta == 1.0:
            inv_div = pl.reciprocal(t, approx=False)
        else:
            inv_div = jnp.exp(-beta * jnp.log(t))

        o_ref[0] = (x * inv_div).astype(o_ref.dtype)

    return lrn_kernel


_VMEM_BUDGET_BYTES = 24 * 1024 * 1024   # explicit buffers (in x2 + out x2 + scratch)
_VMEM_LIMIT_BYTES = 40 * 1024 * 1024    # scoped limit handed to Mosaic (< 64 MiB v7x)


def _choose_spatial_tile(C, HW, itemsize, size):
    """Pick a spatial tile T for the (1, C, T) block.

    Prefers a single full-extent spatial block (T = HW) when the whole footprint
    fits the VMEM budget; otherwise the largest multiple-of-128 tile that fits.
    """
    # Bytes per spatial column: in + out blocks (each double-buffered, input dtype)
    # plus the f32 halo scratch.
    per_col = 4 * C * itemsize + (C + size - 1) * 4
    if per_col * HW <= _VMEM_BUDGET_BYTES or HW <= 128:
        return HW  # full dim (always legal, even when not a multiple of 128)
    max_t = max(128, (_VMEM_BUDGET_BYTES // per_col) // 128 * 128)
    hw_ceil = ((HW + 127) // 128) * 128
    return int(min(max_t, hw_ceil))


def local_response_norm_pallas(x, size, alpha=1e-4, beta=0.75, k=1.0):
    """x: (N, C, H, W) array. Returns array of same shape/dtype."""
    N, C, H, W = x.shape
    HW = H * W
    size = int(size)
    x_flat = x.reshape(N, C, HW)

    itemsize = jnp.dtype(x.dtype).itemsize
    T = _choose_spatial_tile(C, HW, itemsize, size)
    num_t = pl.cdiv(HW, T)

    kernel = _make_lrn_kernel(size, float(alpha), float(beta), float(k), C)

    out_flat = pl.pallas_call(
        kernel,
        out_shape=jax.ShapeDtypeStruct((N, C, HW), x.dtype),
        grid_spec=pltpu.PrefetchScalarGridSpec(
            num_scalar_prefetch=0,
            grid=(N, num_t),
            in_specs=[
                pl.BlockSpec((1, C, T), lambda n, t: (n, 0, t)),
            ],
            out_specs=pl.BlockSpec((1, C, T), lambda n, t: (n, 0, t)),
            scratch_shapes=[pltpu.VMEM((C + size - 1, T), jnp.float32)],
        ),
        compiler_params=pltpu.CompilerParams(
            dimension_semantics=("parallel", "parallel"),
            vmem_limit_bytes=_VMEM_LIMIT_BYTES,
        ),
    )(x_flat)

    return out_flat.reshape(N, C, H, W)


def local_response_norm_ref(x, size, alpha=1e-4, beta=0.75, k=1.0):
    """Pure-JAX reference matching the given PyTorch code (4D branch)."""
    N, C, H, W = x.shape
    x2 = x.astype(jnp.float32) ** 2
    pad_b, pad_a = size // 2, (size - 1) // 2
    x2p = jnp.pad(x2, ((0, 0), (pad_b, pad_a), (0, 0), (0, 0)))
    s = sum(x2p[:, i:i + C] for i in range(size))              # exact windowed sum
    div = (k + alpha * s) ** beta
    return (x.astype(jnp.float32) / div).astype(x.dtype)


if __name__ == "__main__":
    key = jax.random.PRNGKey(0)
    N, C, H, W = 2, 4, 16, 16
    x = jax.random.normal(key, (N, C, H, W), dtype=jnp.float32)

    size, alpha, beta, k = 2, 1e-4, 0.75, 1.0   # module uses LocalResponseNorm(2)

    out = local_response_norm_pallas(x, size, alpha, beta, k)
    out = jax.block_until_ready(out)

    ref = local_response_norm_ref(x, size, alpha, beta, k)
    np.testing.assert_allclose(np.asarray(out), np.asarray(ref), rtol=1e-5, atol=1e-5)

    print("KERNEL_OK")
</pallas_src>

<mosaic_0001>
module attributes {stable_mosaic.version = 11 : i64} {
  func.func @lrn_kernel(%arg0: i32, %arg1: i32, %arg2: memref<1x4x256xf32, #tpu.memory_space<vmem>>, %arg3: memref<1x4x256xf32, #tpu.memory_space<vmem>>, %arg4: memref<5x256xf32, #tpu.memory_space<vmem>>) attributes {dimension_semantics = [#tpu.dimension_semantics<parallel>, #tpu.dimension_semantics<parallel>], iteration_bounds = array<i64: 2, 1>, scalar_prefetch = 0 : i64, scratch_operands = 1 : i64, tpu.core_type = #tpu.core_type<tc>, window_params = [{transform_indices = @transform_0, window_bounds = array<i64: 1, 4, 256>}, {transform_indices = @transform_1, window_bounds = array<i64: 1, 4, 256>}]} {
    %c0 = arith.constant 0 : index
    %c0_0 = arith.constant 0 : index
    %c0_1 = arith.constant 0 : index
    %0 = vector.load %arg2[%c0, %c0_0, %c0_1] : memref<1x4x256xf32, #tpu.memory_space<vmem>>, vector<1x4x256xf32>
    %1 = vector.shape_cast %0 : vector<1x4x256xf32> to vector<4x256xf32>
    %2 = arith.mulf %1, %1 : vector<4x256xf32>
    %cst = arith.constant 0.000000e+00 : f32
    %3 = vector.broadcast %cst : f32 to vector<1x256xf32>
    %c0_2 = arith.constant 0 : index
    %c0_3 = arith.constant 0 : index
    %4 = vector.load %arg4[%c0_2, %c0_3] : memref<5x256xf32, #tpu.memory_space<vmem>>, vector<1x256xf32>
    tpu.vector_store %arg4[%c0_2, %c0_3], %3 {strides = array<i32>} : memref<5x256xf32, #tpu.memory_space<vmem>>, vector<1x256xf32>,
    %c1 = arith.constant 1 : index
    %c0_4 = arith.constant 0 : index
    %5 = vector.load %arg4[%c1, %c0_4] : memref<5x256xf32, #tpu.memory_space<vmem>>, vector<4x256xf32>
    tpu.vector_store %arg4[%c1, %c0_4], %2 {strides = array<i32>} : memref<5x256xf32, #tpu.memory_space<vmem>>, vector<4x256xf32>,
    %c0_5 = arith.constant 0 : index
    %c0_6 = arith.constant 0 : index
    %6 = vector.load %arg4[%c0_5, %c0_6] : memref<5x256xf32, #tpu.memory_space<vmem>>, vector<4x256xf32>
    %7 = arith.addf %2, %6 : vector<4x256xf32>
    %cst_7 = arith.constant 9.99999974E-5 : f32
    %8 = vector.broadcast %cst_7 : f32 to vector<4x256xf32>
    %9 = arith.mulf %8, %7 : vector<4x256xf32>
    %cst_8 = arith.constant 1.000000e+00 : f32
    %10 = vector.broadcast %cst_8 : f32 to vector<4x256xf32>
    %11 = arith.addf %10, %9 : vector<4x256xf32>
    %12 = math.rsqrt %11 : vector<4x256xf32>
    %13 = math.sqrt %12 : vector<4x256xf32>
    %14 = arith.mulf %12, %13 : vector<4x256xf32>
    %15 = arith.mulf %1, %14 : vector<4x256xf32>
    %c0_9 = arith.constant 0 : index
    %c0_10 = arith.constant 0 : index
    %c0_11 = arith.constant 0 : index
    %16 = vector.load %arg3[%c0_9, %c0_10, %c0_11] : memref<1x4x256xf32, #tpu.memory_space<vmem>>, vector<1x4x256xf32>
    %17 = vector.shape_cast %16 : vector<1x4x256xf32> to vector<4x256xf32>
    %18 = vector.shape_cast %15 : vector<4x256xf32> to vector<1x4x256xf32>
    tpu.vector_store %arg3[%c0_9, %c0_10, %c0_11], %18 {strides = array<i32>} : memref<1x4x256xf32, #tpu.memory_space<vmem>>, vector<1x4x256xf32>,
    return
  }
  func.func @transform_0(%arg0: i32, %arg1: i32) -> (i32, i32, i32) {
    %c0_i32 = arith.constant 0 : i32
    %c0_i32_0 = arith.constant 0 : i32
    return %arg0, %c0_i32, %arg1 : i32, i32, i32
  }
  func.func @transform_1(%arg0: i32, %arg1: i32) -> (i32, i32, i32) {
    %c0_i32 = arith.constant 0 : i32
    %c0_i32_0 = arith.constant 0 : i32
    return %arg0, %c0_i32, %arg1 : i32, i32, i32
  }
}

</mosaic_0001>

<llo_original>
// kernel: tpu_custom_call.1
$region0: #{tpu_custom_call.1}
  #allocation0 [shape = 'u32[]', space=smem, size = 0x4, offset = 0x4, fixed_abs, tag = 'smem constant byte address 0x4 - core index']
  #allocation1 [shape = 'u32[144,128]{1,0:T(1,128)}', space=vmem, size = 0x12000, scoped, tag = 'internal scratch']
  #allocation2 [shape = 'f32[5,256]{1,0:T(8,128)}', space=vmem, size = 0x2000, scoped, tag = 'scratch operand']
  %s0 = inlined_call_operand.hbm [shape: f32[2,4,256], index: 0, kind: input, shape index: {}]
  %s1 = inlined_call_operand.hbm [shape: f32[2,4,256], index: 1, kind: output, shape index: {}]
  %s2 = sld [smem:[#allocation0]]
  $region41: #{tpu_custom_call.1} parent=0
    _
  %s4 = ssub.s32 1, %s2
  %s5 = scalar_select 0, %s4, %s2
  $region1: #{tpu_custom_call.1} parent=0
    #allocation3 [shape = 'u8[8192]{0}', space=vmem, size = 0x2000, scoped, tag = 'input window, operand 0']
    #allocation4 [shape = 's32[2]{0}', space=sflag, size = 0x8, scoped, tag = 'scoped memory for tpu_custom_call.1']
    #allocation5 [shape = 's32[2]{0}', space=sflag, size = 0x8, scoped, tag = 'scoped memory for tpu_custom_call.1']
    #allocation6 [shape = 'u8[8192]{0}', space=vmem, size = 0x2000, scoped, tag = 'output window, operand 0']
    %6 = vsyncpa [#allocation4], 0
    %s7 = scalar_lea.sflag [#allocation4], 1
    %8 = vsyncpa %s7, 0
    %9 = vsyncpa [#allocation5], 0
    %s10 = scalar_lea.sflag [#allocation5], 1
    %11 = vsyncpa %s10, 0
    loop: start=0, step=1, limit=4
    $region2: #{tpu_custom_call.1} parent=1 // loop_pre_header
      _
    $region3: #{tpu_custom_call.1} parent=1 // loop_header
      %s13 = sphi 0, %s17
      %p14 = scmp.ge.s32.totalorder %s13, 4
      %s20 = sphi 0, %s32
      %s21 = sphi 0, %s28
      %s22 = sphi 0, %s20
      %s23 = sphi 0, %s21
      %s24 = sphi 0, %s22
      %s25 = sphi 0, %s23
      %s37 = sphi 0, %s39
      %s40 = sphi 0, %s37
      %s41 = sphi 0, %s40
      %s57 = sphi 0, %s41
      %s65 = sphi 0, %s67
      %s68 = sphi 0, %s65
      %s69 = sphi 0, %s68
      %s85 = sphi 0, %s69
    $region4: #{tpu_custom_call.1} parent=1 // loop_header_branch
      %16 = sbr.rel (%p14) target = $region8
    $region5: #{tpu_custom_call.1} parent=1 // loop_body
      %s18 = ssub.s32 %s13, 1
      %s19 = ssub.s32 %s13, 2
      %s26 = sadd.s32 1, %s21
      %p27 = scmp.ge.s32.totalorder %s26, 1
      %s28 = scalar_select %p27, 0, %s26
      %s29 = sadd.s32 1, %s20
      %s30 = scalar_select %p27, %s29, %s20
      %p31 = scmp.ge.s32.totalorder %s30, 2
      %s32 = scalar_select %p31, 0, %s30
      %s33 = ssub.s32 %s20, %s32
      %s34 = ssub.s32 %s21, %s28
      %s35 = sor.u32 %s33, %s34
      %p36 = scmp.eq.s32.totalorder %s35, 0
      %s38 = sadd.s32 %s37, 1
      %s39 = scalar_select %p36, %s37, %s38
      %p42 = pneg %p36
      %p43 = scmp.eq.s32.totalorder %s13, 1
      %p44 = por %p42, %p43
      %p45 = scmp.ne.s32.totalorder %s37, %s40
      %p46 = scmp.eq.s32.totalorder %s13, 0
      %p47 = por %p45, %p46
      %p48 = scmp.ne.s32.totalorder %s37, %s40
      %p49 = scmp.eq.s32.totalorder %s18, 1
      %p50 = por %p48, %p49
      %p51 = scmp.ne.s32.totalorder %s40, %s41
      %p52 = scmp.eq.s32.totalorder %s18, 0
      %p53 = por %p51, %p52
      %p54 = scmp.ne.s32.totalorder %s40, %s41
      %p55 = scmp.eq.s32.totalorder %s19, 1
      %p56 = por %p54, %p55
      %p58 = scmp.ne.s32.totalorder %s41, %s57
      %p59 = scmp.eq.s32.totalorder %s19, 0
      %p60 = por %p58, %p59
      %s61 = ssub.s32 %s20, %s32
      %s62 = ssub.s32 %s21, %s28
      %s63 = sor.u32 %s61, %s62
      %p64 = scmp.eq.s32.totalorder %s63, 0
      %s66 = sadd.s32 %s65, 1
      %s67 = scalar_select %p64, %s65, %s66
      %p70 = pneg %p64
      %p71 = scmp.eq.s32.totalorder %s13, 1
      %p72 = por %p70, %p71
      %p73 = scmp.ne.s32.totalorder %s65, %s68
      %p74 = scmp.eq.s32.totalorder %s13, 0
      %p75 = por %p73, %p74
      %p76 = scmp.ne.s32.totalorder %s65, %s68
      %p77 = scmp.eq.s32.totalorder %s18, 1
      %p78 = por %p76, %p77
      %p79 = scmp.ne.s32.totalorder %s68, %s69
      %p80 = scmp.eq.s32.totalorder %s18, 0
      %p81 = por %p79, %p80
      %p82 = scmp.ne.s32.totalorder %s68, %s69
      %p83 = scmp.eq.s32.totalorder %s19, 1
      %p84 = por %p82, %p83
      %p86 = scmp.ne.s32.totalorder %s69, %s85
      %p87 = scmp.eq.s32.totalorder %s19, 0
      %p88 = por %p86, %p87
      %p89 = scmp.le.s32.totalorder 1, %s13
      %p90 = scmp.lt.s32.totalorder %s13, 3
      %p91 = pnand %p89, %p90
      %p92 = pneg %p91
      // Predicated region
      $region9: #{tpu_custom_call.1} parent=5 // pred_check
        _
      $region10: #{tpu_custom_call.1} parent=5 // pred_check_branch
        %94 = sbr.rel (%p91) target = $region12
      $region11: #{tpu_custom_call.1} parent=5 // pred_region
        %s95 = ssub.s32 %s13, 1
      $region12: #{tpu_custom_call.1} parent=5 // pred_fallthru
        _
      %p96 = scmp.lt.s32.totalorder %s13, 2
      // Predicated region
      $region13: #{tpu_custom_call.1} parent=5 // pred_check
        %p97 = pneg %p96
      $region14: #{tpu_custom_call.1} parent=5 // pred_check_branch
        %99 = sbr.rel (%p97) target = $region16
      $region15: #{tpu_custom_call.1} parent=5 // pred_region
        // Predicated region
        $region17: #{tpu_custom_call.1} parent=15 // pred_check
          %p100 = pneg %p47
        $region18: #{tpu_custom_call.1} parent=15 // pred_check_branch
          %102 = sbr.rel (%p100) target = $region20
        $region19: #{tpu_custom_call.1} parent=15 // pred_region
          %s103 = sand.u32 %s37, 1
          %s104 = scalar_lea.sflag [#allocation4], %s103
          %s105 = sand.u32 %s37, 1
          %s106 = smul.addr %s105, 8
          %s107 = scalar_lea.vmem [#allocation3], %s106
          %s108 = smul.u32 2, %s21
          %s110 = ssub.s32 128, 128
          %111 = vsyncadd %s104, %s110
          %s112 = smul.addr %s20, 2
          %s113 = sadd.s32 %s108, %s112
          %s114 = smul.addr %s113, 64
          %s115 = scalar_lea.hbm %s0, %s114
          %s117 = sshll.u32 %s107, 4
          %s118 = int_to_ptr.vmem [resolvable:$true] %s117
          %120 = dma.hbm_to_vmem [thread:$0]  %s115, 128, %s118, %s104
        $region20: #{tpu_custom_call.1} parent=15 // pred_fallthru
          _
      $region16: #{tpu_custom_call.1} parent=5 // pred_fallthru
        _
      %p121 = scmp.le.s32.totalorder 1, %s13
      %p122 = scmp.lt.s32.totalorder %s13, 3
      %p123 = pnand %p121, %p122
      %p124 = pneg %p123
      // Predicated region
      $region21: #{tpu_custom_call.1} parent=5 // pred_check
        _
      $region22: #{tpu_custom_call.1} parent=5 // pred_check_branch
        %126 = sbr.rel (%p123) target = $region24
      $region23: #{tpu_custom_call.1} parent=5 // pred_region
        %s127 = ssub.s32 %s13, 1
        %s128 = sand.u32 %s40, 1
        %s129 = scalar_lea.sflag [#allocation4], %s128
        %s130 = sand.u32 %s40, 1
        %s131 = smul.addr %s130, 8
        %s132 = scalar_lea.vmem [#allocation3], %s131
        // Predicated region
        $region25: #{tpu_custom_call.1} parent=23 // pred_check
          %p133 = pneg %p53
        $region26: #{tpu_custom_call.1} parent=23 // pred_check_branch
          %135 = sbr.rel (%p133) target = $region28
        $region27: #{tpu_custom_call.1} parent=23 // pred_region
          %136 = dma.done %s129, 128
        $region28: #{tpu_custom_call.1} parent=23 // pred_fallthru
          _
        %s137 = sand.u32 %s40, 1
        %s138 = scalar_lea.sflag [#allocation4], %s137
        %s139 = sand.u32 %s40, 1
        %s140 = smul.addr %s139, 8
        %s141 = scalar_lea.vmem [#allocation3], %s140
        %p142 = pneg %p53
        %p143 = pneg %p50
        %p144 = pneg %p81
        %p145 = pneg %p78
        %s146 = sand.u32 %s68, 1
        %s147 = scalar_lea.sflag [#allocation5], %s146
        %s148 = sand.u32 %s68, 1
        %s149 = smul.addr %s148, 8
        %s150 = scalar_lea.vmem [#allocation6], %s149
        %s151 = smul.u32 2, %s23
        %s152 = smul.u32 2, %s23
        %v153 = vld [vmem:[%s132] sm:$0xff]
        %v154 = vmul.f32 %v153, %v153
        %v155 = vlaneseq
        %vm156 = vcmp.ge.s32.totalorder %v155, 0
        %vm157 = vcmp.lt.s32.totalorder %v155, 256
        %vm158 = vmand %vm156, %vm157
        %159 = vst.msk [vmem:[#allocation2] ss:$8 sm:$0x3] %vm158, 0.0
        %160 = vst.msk [vmem:[#allocation2] ss:$8 sm:$0x0] %vm158, 0.0
        %v162 = vcombine.high %v154, %v154
        %v163 = vrot.slane %v154, 7
        %v164 = vrot.slane %v162, 7
        %167 = vst [vmem:[#allocation2] sm:$0x1e] %v163
        %168 = vst [vmem:[#allocation2 + $0x8] sm:$0x1e] %v164
        %v169 = vld [vmem:[#allocation2] sm:$0xf]
        %v170 = vld [vmem:[#allocation2 + $0x8] sm:$0xf]
        %v173 = vcombine.low %v169, %v170
        %v175 = vadd.f32 %v154, %v173
        %v176 = vmul.f32 %v175, 0.0001
        %v177 = vadd.f32 %v176, 1.0
        %v178 = vrsqrt.pop %v177
        %v179 = vrsqrt.pop %v178
        %v180 = vmul.f32 %v178, %v179
        %vm181 = vcmp.eq.f32.partialorder %v178, inf
        %v182 = vsel %vm181, %v178, %v180
        %vm183 = vcmp.eq.f32.partialorder %v178, 0.0
        %v184 = vand.u32 %v178, 2147483648
        %v185 = vsel %vm183, %v184, %v182
        %v186 = vmul.f32 %v178, %v185
        %v187 = vmul.f32 %v153, %v186
        %188 = vst [vmem:[%s150] sm:$0xff] %v187
        %s189 = sand.u32 %s68, 1
        %s190 = scalar_lea.sflag [#allocation5], %s189
        %s191 = sand.u32 %s68, 1
        %s192 = smul.addr %s191, 8
        %s193 = scalar_lea.vmem [#allocation6], %s192
        // Predicated region
        $region29: #{tpu_custom_call.1} parent=23 // pred_check
          %p194 = pneg %p78
        $region30: #{tpu_custom_call.1} parent=23 // pred_check_branch
          %196 = sbr.rel (%p194) target = $region32
        $region31: #{tpu_custom_call.1} parent=23 // pred_region
          %s197 = smul.u32 2, %s23
          %s199 = ssub.s32 128, 128
          %200 = vsyncadd %s190, %s199
          %s201 = smul.addr %s22, 2
          %s202 = sadd.s32 %s197, %s201
          %s203 = smul.addr %s202, 64
          %s204 = scalar_lea.hbm %s1, %s203
          %s206 = sshll.u32 %s193, 4
          %s207 = int_to_ptr.vmem [resolvable:$true] %s206
          %209 = dma.vmem_to_hbm [thread:$0]  %s207, 128, %s204, %s190
        $region32: #{tpu_custom_call.1} parent=23 // pred_fallthru
          _
      $region24: #{tpu_custom_call.1} parent=5 // pred_fallthru
        _
      %p210 = scmp.le.s32.totalorder 2, %s13
      // Predicated region
      $region33: #{tpu_custom_call.1} parent=5 // pred_check
        %p211 = pneg %p210
      $region34: #{tpu_custom_call.1} parent=5 // pred_check_branch
        %213 = sbr.rel (%p211) target = $region36
      $region35: #{tpu_custom_call.1} parent=5 // pred_region
        %s214 = ssub.s32 %s13, 2
        // Predicated region
        $region37: #{tpu_custom_call.1} parent=35 // pred_check
          %p215 = pneg %p84
        $region38: #{tpu_custom_call.1} parent=35 // pred_check_branch
          %217 = sbr.rel (%p215) target = $region40
        $region39: #{tpu_custom_call.1} parent=35 // pred_region
          %s218 = sand.u32 %s69, 1
          %s219 = scalar_lea.sflag [#allocation5], %s218
          %s220 = sand.u32 %s69, 1
          %s221 = smul.addr %s220, 8
          %s222 = scalar_lea.vmem [#allocation6], %s221
          %223 = dma.done %s219, 128
        $region40: #{tpu_custom_call.1} parent=35 // pred_fallthru
          _
      $region36: #{tpu_custom_call.1} parent=5 // pred_fallthru
        _
    $region6: #{tpu_custom_call.1} parent=1 // loop_footer
      %s17 = sadd.s32 1, %s13
    $region7: #{tpu_custom_call.1} parent=1 // loop_footer_branch
      %12 = sbr.rel target = $region3
    $region8: #{tpu_custom_call.1} parent=1 // loop_exit
      _
    %224 = vsyncpa [#allocation4], 1
    %s225 = scalar_lea.sflag [#allocation4], 1
    %226 = vsyncpa %s225, 1
    %227 = vsyncpa [#allocation5], 1
    %s228 = scalar_lea.sflag [#allocation5], 1
    %229 = vsyncpa %s228, 1

</llo_original>
